<compile_context>
chip_gen: v5e
topology: v5e:2x2
jax: 0.10.0
libtpu: 0.0.40
codegen_flags: <defaults>
</compile_context>

<pallas_src>
import jax
import jax.numpy as jnp
from jax.experimental import pallas as pl
from jax.experimental.pallas import tpu as pltpu

IN_FEATURES = 3
OUT_FEATURES = 2
SUBLANES = 8
LANES = 128
MIN_TILE = SUBLANES * LANES      # 1024 batch elements = one (8,128) slab
MAX_TILE = 131072                # ~128K batch elems/step ~= 2.6 MB HBM traffic


def _cdiv(a, b):
    return (a + b - 1) // b


def _round_up(v, m):
    return _cdiv(v, m) * m


def linear_kernel(w_ref, b_ref, x_ref, o_ref):
    # w_ref: SMEM (OUT, IN)   f32  (torch weight layout)
    # b_ref: SMEM (OUT,)      f32
    # x_ref: VMEM (IN, 8, TL) f32  (batch packed on sublanes + lanes)
    # o_ref: VMEM (OUT, 8, TL) f32
    # Hoist all SMEM scalar reads out of the compute loops.
    w = [[w_ref[o, k] for k in range(IN_FEATURES)] for o in range(OUT_FEATURES)]
    bias = [b_ref[o] for o in range(OUT_FEATURES)]

    x = x_ref[...]                                  # (IN, 8, TL), loaded once
    for o in range(OUT_FEATURES):                   # static unroll (OUT = 2)
        acc = w[o][0] * x[0]                        # full (8, TL) vreg slabs
        for k in range(1, IN_FEATURES):             # static unroll (IN = 3)
            acc = acc + w[o][k] * x[k]
        o_ref[o] = acc + bias[o]                    # single vector bias add


def mnist_logistic_forward(x, w, b):
    """x: (B, IN) f32 (PyTorch layout), w: (OUT, IN) f32 (torch weight), b: (OUT,) f32."""
    B = x.shape[0]

    # Adaptive batch tile: at most ~128K batch elems/step, at least one full
    # (8,128) slab, multiple of 1024, and >= 2 grid steps once B is big enough
    # (so v7x's two TensorCores each stream half the batch). Padding waste is
    # bounded to < one tile.
    n_steps = max(2, _cdiv(B, MAX_TILE))
    tb = _round_up(_cdiv(B, n_steps), MIN_TILE)     # batch elems per grid step
    b_pad = _round_up(B, tb)
    grid = b_pad // tb
    tl = tb // SUBLANES                             # lane extent per block

    # Layout plumbing (batch onto sublanes+lanes); the reshape is a free
    # row-major metadata change. In a full model, keep activations in this
    # (features, batch) layout across layers instead of round-tripping.
    x_t = jnp.pad(x.astype(jnp.float32).T, ((0, 0), (0, b_pad - B)))
    x3 = x_t.reshape(IN_FEATURES, SUBLANES, b_pad // SUBLANES)

    out3 = pl.pallas_call(
        linear_kernel,
        out_shape=jax.ShapeDtypeStruct(
            (OUT_FEATURES, SUBLANES, b_pad // SUBLANES), jnp.float32
        ),
        grid_spec=pltpu.PrefetchScalarGridSpec(
            num_scalar_prefetch=0,
            grid=(grid,),
            in_specs=[
                # Tiny parameters live in SMEM; scalar reads feed VPU mul-adds.
                pl.BlockSpec(memory_space=pltpu.MemorySpace.SMEM),  # w (OUT, IN)
                pl.BlockSpec(memory_space=pltpu.MemorySpace.SMEM),  # b (OUT,)
                # x packed (IN, 8, TL), tiled over the lane axis.
                pl.BlockSpec((IN_FEATURES, SUBLANES, tl), lambda i: (0, 0, i)),
            ],
            out_specs=pl.BlockSpec(
                (OUT_FEATURES, SUBLANES, tl), lambda i: (0, 0, i)
            ),
        ),
        compiler_params=pltpu.CompilerParams(
            dimension_semantics=("parallel",),  # v7x: shard batch tiles across TCs
        ),
    )(w, b, x3)

    # Back to the PyTorch (B, OUT) layout (padded columns hold bias-only
    # garbage and are sliced off here).
    out_t = out3.reshape(OUT_FEATURES, b_pad)
    return out_t[:, :B].T


if __name__ == "__main__":
    key = jax.random.PRNGKey(0)
    kx, kw, kb = jax.random.split(key, 3)

    B = 8  # small batch
    x = jax.random.normal(kx, (B, IN_FEATURES), dtype=jnp.float32)

    # Deterministic parameter init (matching nn.Linear(3, 2) shapes):
    # torch weight is (OUT, IN); bias is (OUT,).
    bound = 1.0 / (IN_FEATURES ** 0.5)
    w = jax.random.uniform(
        kw, (OUT_FEATURES, IN_FEATURES), minval=-bound, maxval=bound,
        dtype=jnp.float32,
    )
    b = jax.random.uniform(
        kb, (OUT_FEATURES,), minval=-bound, maxval=bound, dtype=jnp.float32
    )

    out = mnist_logistic_forward(x, w, b)
    jax.block_until_ready(out)

    # Sanity check against plain JAX reference (matches torch: x @ W^T + b).
    ref = x @ w.T + b
    assert out.shape == (B, OUT_FEATURES)
    assert jnp.allclose(out, ref, atol=1e-5, rtol=1e-5)

    print("KERNEL_OK")
</pallas_src>

<mosaic_0001>
module attributes {stable_mosaic.version = 11 : i64} {
  func.func @linear_kernel(%arg0: i32, %arg1: memref<2x3xf32, #tpu.memory_space<smem>>, %arg2: memref<2xf32, #tpu.memory_space<smem>>, %arg3: memref<3x8x128xf32, #tpu.memory_space<vmem>>, %arg4: memref<2x8x128xf32, #tpu.memory_space<vmem>>) attributes {dimension_semantics = [#tpu.dimension_semantics<parallel>], iteration_bounds = array<i64: 1>, scalar_prefetch = 0 : i64, scratch_operands = 0 : i64, tpu.core_type = #tpu.core_type<tc>, window_params = [{transform_indices = @transform_0, window_bounds = array<i64: 2, 3>}, {transform_indices = @transform_1, window_bounds = array<i64: 2>}, {transform_indices = @transform_2, window_bounds = array<i64: 3, 8, 128>}, {transform_indices = @transform_3, window_bounds = array<i64: 2, 8, 128>}]} {
    %c0 = arith.constant 0 : index
    %c0_0 = arith.constant 0 : index
    %0 = memref.load %arg1[%c0, %c0_0] : memref<2x3xf32, #tpu.memory_space<smem>>
    %c0_1 = arith.constant 0 : index
    %c1 = arith.constant 1 : index
    %1 = memref.load %arg1[%c0_1, %c1] : memref<2x3xf32, #tpu.memory_space<smem>>
    %c0_2 = arith.constant 0 : index
    %c2 = arith.constant 2 : index
    %2 = memref.load %arg1[%c0_2, %c2] : memref<2x3xf32, #tpu.memory_space<smem>>
    %c1_3 = arith.constant 1 : index
    %c0_4 = arith.constant 0 : index
    %3 = memref.load %arg1[%c1_3, %c0_4] : memref<2x3xf32, #tpu.memory_space<smem>>
    %c1_5 = arith.constant 1 : index
    %c1_6 = arith.constant 1 : index
    %4 = memref.load %arg1[%c1_5, %c1_6] : memref<2x3xf32, #tpu.memory_space<smem>>
    %c1_7 = arith.constant 1 : index
    %c2_8 = arith.constant 2 : index
    %5 = memref.load %arg1[%c1_7, %c2_8] : memref<2x3xf32, #tpu.memory_space<smem>>
    %c0_9 = arith.constant 0 : index
    %6 = memref.load %arg2[%c0_9] : memref<2xf32, #tpu.memory_space<smem>>
    %c1_10 = arith.constant 1 : index
    %7 = memref.load %arg2[%c1_10] : memref<2xf32, #tpu.memory_space<smem>>
    %c0_11 = arith.constant 0 : index
    %c0_12 = arith.constant 0 : index
    %c0_13 = arith.constant 0 : index
    %8 = vector.load %arg3[%c0_11, %c0_12, %c0_13] : memref<3x8x128xf32, #tpu.memory_space<vmem>>, vector<3x8x128xf32>
    %9 = vector.extract_strided_slice %8 {offsets = [0, 0, 0], sizes = [1, 8, 128], strides = [1, 1, 1]} : vector<3x8x128xf32> to vector<1x8x128xf32>
    %10 = vector.shape_cast %9 : vector<1x8x128xf32> to vector<8x128xf32>
    %11 = vector.broadcast %0 : f32 to vector<8x128xf32>
    %12 = arith.mulf %11, %10 : vector<8x128xf32>
    %13 = vector.extract_strided_slice %8 {offsets = [1, 0, 0], sizes = [1, 8, 128], strides = [1, 1, 1]} : vector<3x8x128xf32> to vector<1x8x128xf32>
    %14 = vector.shape_cast %13 : vector<1x8x128xf32> to vector<8x128xf32>
    %15 = vector.broadcast %1 : f32 to vector<8x128xf32>
    %16 = arith.mulf %15, %14 : vector<8x128xf32>
    %17 = arith.addf %12, %16 : vector<8x128xf32>
    %18 = vector.extract_strided_slice %8 {offsets = [2, 0, 0], sizes = [1, 8, 128], strides = [1, 1, 1]} : vector<3x8x128xf32> to vector<1x8x128xf32>
    %19 = vector.shape_cast %18 : vector<1x8x128xf32> to vector<8x128xf32>
    %20 = vector.broadcast %2 : f32 to vector<8x128xf32>
    %21 = arith.mulf %20, %19 : vector<8x128xf32>
    %22 = arith.addf %17, %21 : vector<8x128xf32>
    %23 = vector.broadcast %6 : f32 to vector<8x128xf32>
    %24 = arith.addf %22, %23 : vector<8x128xf32>
    %c0_14 = arith.constant 0 : index
    %c0_15 = arith.constant 0 : index
    %c0_16 = arith.constant 0 : index
    %25 = vector.load %arg4[%c0_14, %c0_15, %c0_16] : memref<2x8x128xf32, #tpu.memory_space<vmem>>, vector<1x8x128xf32>
    %26 = vector.shape_cast %25 : vector<1x8x128xf32> to vector<8x128xf32>
    %27 = vector.shape_cast %24 : vector<8x128xf32> to vector<1x8x128xf32>
    tpu.vector_store %arg4[%c0_14, %c0_15, %c0_16], %27 {strides = array<i32>} : memref<2x8x128xf32, #tpu.memory_space<vmem>>, vector<1x8x128xf32>,
    %28 = vector.extract_strided_slice %8 {offsets = [0, 0, 0], sizes = [1, 8, 128], strides = [1, 1, 1]} : vector<3x8x128xf32> to vector<1x8x128xf32>
    %29 = vector.shape_cast %28 : vector<1x8x128xf32> to vector<8x128xf32>
    %30 = vector.broadcast %3 : f32 to vector<8x128xf32>
    %31 = arith.mulf %30, %29 : vector<8x128xf32>
    %32 = vector.extract_strided_slice %8 {offsets = [1, 0, 0], sizes = [1, 8, 128], strides = [1, 1, 1]} : vector<3x8x128xf32> to vector<1x8x128xf32>
    %33 = vector.shape_cast %32 : vector<1x8x128xf32> to vector<8x128xf32>
    %34 = vector.broadcast %4 : f32 to vector<8x128xf32>
    %35 = arith.mulf %34, %33 : vector<8x128xf32>
    %36 = arith.addf %31, %35 : vector<8x128xf32>
    %37 = vector.extract_strided_slice %8 {offsets = [2, 0, 0], sizes = [1, 8, 128], strides = [1, 1, 1]} : vector<3x8x128xf32> to vector<1x8x128xf32>
    %38 = vector.shape_cast %37 : vector<1x8x128xf32> to vector<8x128xf32>
    %39 = vector.broadcast %5 : f32 to vector<8x128xf32>
    %40 = arith.mulf %39, %38 : vector<8x128xf32>
    %41 = arith.addf %36, %40 : vector<8x128xf32>
    %42 = vector.broadcast %7 : f32 to vector<8x128xf32>
    %43 = arith.addf %41, %42 : vector<8x128xf32>
    %c1_17 = arith.constant 1 : index
    %c0_18 = arith.constant 0 : index
    %c0_19 = arith.constant 0 : index
    %44 = vector.load %arg4[%c1_17, %c0_18, %c0_19] : memref<2x8x128xf32, #tpu.memory_space<vmem>>, vector<1x8x128xf32>
    %45 = vector.shape_cast %44 : vector<1x8x128xf32> to vector<8x128xf32>
    %46 = vector.shape_cast %43 : vector<8x128xf32> to vector<1x8x128xf32>
    tpu.vector_store %arg4[%c1_17, %c0_18, %c0_19], %46 {strides = array<i32>} : memref<2x8x128xf32, #tpu.memory_space<vmem>>, vector<1x8x128xf32>,
    return
  }
  func.func @transform_0(%arg0: i32) -> (i32, i32) {
    %c0_i32 = arith.constant 0 : i32
    %c0_i32_0 = arith.constant 0 : i32
    %c0_i32_1 = arith.constant 0 : i32
    return %c0_i32, %c0_i32_0 : i32, i32
  }
  func.func @transform_1(%arg0: i32) -> i32 {
    %c0_i32 = arith.constant 0 : i32
    %c0_i32_0 = arith.constant 0 : i32
    return %c0_i32 : i32
  }
  func.func @transform_2(%arg0: i32) -> (i32, i32, i32) {
    %c0_i32 = arith.constant 0 : i32
    %c0_i32_0 = arith.constant 0 : i32
    %c0_i32_1 = arith.constant 0 : i32
    return %c0_i32, %c0_i32_0, %arg0 : i32, i32, i32
  }
  func.func @transform_3(%arg0: i32) -> (i32, i32, i32) {
    %c0_i32 = arith.constant 0 : i32
    %c0_i32_0 = arith.constant 0 : i32
    %c0_i32_1 = arith.constant 0 : i32
    return %c0_i32, %c0_i32_0, %arg0 : i32, i32, i32
  }
}

</mosaic_0001>

<llo_original>
// kernel: tpu_custom_call.1
$region0: #{tpu_custom_call.1}
  #allocation0 [shape = 'u32[]', space=smem, size = 0x4, offset = 0x4, fixed_abs, tag = 'smem constant byte address 0x4 - core index']
  #allocation1 [shape = 'u32[72,128]{1,0:T(1,128)}', space=vmem, size = 0x9000, scoped, tag = 'internal scratch']
  %s0 = inlined_call_operand.hbm [shape: f32[2,3], index: 0, kind: input, shape index: {}]
  %s1 = inlined_call_operand.hbm [shape: f32[2], index: 1, kind: input, shape index: {}]
  %s2 = inlined_call_operand.hbm [shape: f32[3,8,128], index: 2, kind: input, shape index: {}]
  %s3 = inlined_call_operand.hbm [shape: f32[2,8,128], index: 3, kind: output, shape index: {}]
  %s4 = sld [smem:[#allocation0]]
  $region34: #{tpu_custom_call.1} parent=0
    _
  %s6 = ssub.s32 1, %s4
  %s7 = scalar_select 0, %s6, %s4
  $region1: #{tpu_custom_call.1} parent=0
    #allocation2 [shape = 'u8[1024]{0}', space=smem, size = 0x400, scoped, tag = 'input window, operand 0, single buffered']
    #allocation3 [shape = 's32[1]{0}', space=sflag, size = 0x4, scoped, tag = 'scoped memory for tpu_custom_call.1']
    #allocation4 [shape = 's32[1]{0}', space=sflag, size = 0x4, scoped, tag = 'scoped memory for tpu_custom_call.1']
    #allocation5 [shape = 's32[1]{0}', space=sflag, size = 0x4, scoped, tag = 'scoped memory for tpu_custom_call.1']
    #allocation6 [shape = 'u8[512]{0}', space=smem, size = 0x200, scoped, tag = 'input window, operand 1, single buffered']
    #allocation7 [shape = 's32[1]{0}', space=sflag, size = 0x4, scoped, tag = 'scoped memory for tpu_custom_call.1']
    #allocation8 [shape = 'u8[12288]{0}', space=vmem, size = 0x3000, scoped, tag = 'input window, operand 2, single buffered']
    #allocation9 [shape = 'u8[8192]{0}', space=vmem, size = 0x2000, scoped, tag = 'output window, operand 0, single buffered']
    %8 = vsyncpa [#allocation5], 0
    %9 = vsyncpa [#allocation7], 0
    %10 = vsyncpa [#allocation3], 0
    %11 = vsyncpa [#allocation4], 0
    // Predicated region
    $region2: #{tpu_custom_call.1} parent=1 // pred_check
      _
    $region3: #{tpu_custom_call.1} parent=1 // pred_check_branch
      %13 = sbr.rel (0) target = $region5
    $region4: #{tpu_custom_call.1} parent=1 // pred_region
      %15 = vsyncadd [#allocation5], 0
      %s17 = sshll.u32 %s0, 4
      %s18 = int_to_ptr.hbm [resolvable:$true] %s17
      %20 = dma.hbm_to_smem %s18, 32, [#allocation2], [#allocation5]
    $region5: #{tpu_custom_call.1} parent=1 // pred_fallthru
      _
    // Predicated region
    $region6: #{tpu_custom_call.1} parent=1 // pred_check
      _
    $region7: #{tpu_custom_call.1} parent=1 // pred_check_branch
      %22 = sbr.rel (0) target = $region9
    $region8: #{tpu_custom_call.1} parent=1 // pred_region
      %24 = vsyncadd [#allocation7], 0
      %s26 = sshll.u32 %s1, 4
      %s27 = int_to_ptr.hbm [resolvable:$true] %s26
      %29 = dma.hbm_to_smem %s27, 16, [#allocation6], [#allocation7]
    $region9: #{tpu_custom_call.1} parent=1 // pred_fallthru
      _
    // Predicated region
    $region10: #{tpu_custom_call.1} parent=1 // pred_check
      _
    $region11: #{tpu_custom_call.1} parent=1 // pred_check_branch
      %31 = sbr.rel (0) target = $region13
    $region12: #{tpu_custom_call.1} parent=1 // pred_region
      %33 = vsyncadd [#allocation3], 0
      %s34 = sshll.u32 %s2, 4
      %s35 = int_to_ptr.hbm [resolvable:$true] %s34
      %s36 = sshll.u32 [#allocation8], 4
      %s37 = int_to_ptr.vmem [resolvable:$true] %s36
      %42 = dma.hbm_to_vmem [thread:$0]  %s35, 384, %s37, [#allocation3], 128, 128, 8
    $region13: #{tpu_custom_call.1} parent=1 // pred_fallthru
      _
    // Predicated region
    $region14: #{tpu_custom_call.1} parent=1 // pred_check
      _
    $region15: #{tpu_custom_call.1} parent=1 // pred_check_branch
      %44 = sbr.rel (0) target = $region17
    $region16: #{tpu_custom_call.1} parent=1 // pred_region
      %46 = dma.done [#allocation5], 32
    $region17: #{tpu_custom_call.1} parent=1 // pred_fallthru
      _
    // Predicated region
    $region18: #{tpu_custom_call.1} parent=1 // pred_check
      _
    $region19: #{tpu_custom_call.1} parent=1 // pred_check_branch
      %48 = sbr.rel (0) target = $region21
    $region20: #{tpu_custom_call.1} parent=1 // pred_region
      %50 = dma.done [#allocation7], 16
    $region21: #{tpu_custom_call.1} parent=1 // pred_fallthru
      _
    // Predicated region
    $region22: #{tpu_custom_call.1} parent=1 // pred_check
      _
    $region23: #{tpu_custom_call.1} parent=1 // pred_check_branch
      %52 = sbr.rel (0) target = $region25
    $region24: #{tpu_custom_call.1} parent=1 // pred_region
      %54 = dma.done [#allocation3], 384
    $region25: #{tpu_custom_call.1} parent=1 // pred_fallthru
      _
    %55 = sfence
    %s56 = sld [smem:[#allocation2]]
    %s57 = sld [smem:[#allocation2 + $0x1]]
    %s58 = sld [smem:[#allocation2 + $0x2]]
    %s59 = sld [smem:[#allocation2 + $0x80]]
    %s60 = sld [smem:[#allocation2 + $0x81]]
    %s61 = sld [smem:[#allocation2 + $0x82]]
    %s62 = sld [smem:[#allocation6]]
    %s63 = sld [smem:[#allocation6 + $0x1]]
    %v64 = vld [vmem:[#allocation8] sm:$0xff]
    %v65 = vld [vmem:[#allocation8 + $0x8] sm:$0xff]
    %v66 = vld [vmem:[#allocation8 + $0x10] sm:$0xff]
    %v67 = vstv %s56
    %v68 = vmul.f32 %v67, %v64
    %v69 = vstv %s57
    %v70 = vmul.f32 %v69, %v65
    %v71 = vadd.f32 %v68, %v70
    %v72 = vstv %s58
    %v73 = vmul.f32 %v72, %v66
    %v74 = vadd.f32 %v71, %v73
    %v75 = vstv %s62
    %v76 = vadd.f32 %v74, %v75
    %77 = vst [vmem:[#allocation9] sm:$0xff] %v76
    %v78 = vstv %s59
    %v79 = vmul.f32 %v78, %v64
    %v80 = vstv %s60
    %v81 = vmul.f32 %v80, %v65
    %v82 = vadd.f32 %v79, %v81
    %v83 = vstv %s61
    %v84 = vmul.f32 %v83, %v66
    %v85 = vadd.f32 %v82, %v84
    %v86 = vstv %s63
    %v87 = vadd.f32 %v85, %v86
    %s88 = scalar_lea.vmem [#allocation9], 8
    %89 = vst [vmem:[%s88] sm:$0xff] %v87
    // Predicated region
    $region26: #{tpu_custom_call.1} parent=1 // pred_check
      _
    $region27: #{tpu_custom_call.1} parent=1 // pred_check_branch
      %91 = sbr.rel (0) target = $region29
    $region28: #{tpu_custom_call.1} parent=1 // pred_region
      %93 = vsyncadd [#allocation4], 0
      %s94 = sshll.u32 [#allocation9], 4
      %s95 = int_to_ptr.vmem [resolvable:$true] %s94
      %s96 = sshll.u32 %s3, 4
      %s97 = int_to_ptr.hbm [resolvable:$true] %s96
      %102 = dma.vmem_to_hbm [thread:$0]  %s95, 256, %s97, [#allocation4], 128, 128, 8
    $region29: #{tpu_custom_call.1} parent=1 // pred_fallthru
      _
    // Predicated region
    $region30: #{tpu_custom_call.1} parent=1 // pred_check
      _
    $region31: #{tpu_custom_call.1} parent=1 // pred_check_branch
      %104 = sbr.rel (0) target = $region33
    $region32: #{tpu_custom_call.1} parent=1 // pred_region
      %106 = dma.done [#allocation4], 256
    $region33: #{tpu_custom_call.1} parent=1 // pred_fallthru
      _
    %107 = vsyncpa [#allocation3], 1
    %108 = vsyncpa [#allocation4], 1
    %109 = vsyncpa [#allocation5], 1
    %110 = vsyncpa [#allocation7], 1

</llo_original>
